<compile_context>
chip_gen: v7x
topology: tpu7x:2x2x1
jax: 0.10.0
libtpu: 0.0.40
codegen_flags: <defaults>
</compile_context>

<pallas_src>
import functools

import jax
import jax.numpy as jnp
from jax import lax
from jax.experimental import pallas as pl
from jax.experimental.pallas import tpu as pltpu

HIDDEN = 128           # affine1 output width (fixed by the module)
HEAD_LANES = 128       # lane-padded fused head width (A + 1 <= 128)
MAX_BATCH_TILE = 4096  # upper bound on rows per grid step
_VMEM_TILE_BUDGET = 24 << 20  # stay well under the 32 MiB scoped-VMEM default


def _policy_kernel(x_ref, w1_ref, b1_ref, wh_ref, bh_ref, out_ref, *, n_actions):
    # Hidden layer: relu(x @ W1 + b1); MXU accumulates in f32.
    h = jnp.dot(x_ref[...], w1_ref[...], preferred_element_type=jnp.float32)
    h = jnp.maximum(h + b1_ref[...], 0.0)                      # (TB, 128) f32

    # Fused actor+critic heads: one (TB,128) @ (128,128) MXU pass.
    # Columns [0:A] are action logits, column A is the state value, rest zero.
    logits_all = jnp.dot(h.astype(wh_ref.dtype), wh_ref[...],
                         preferred_element_type=jnp.float32)
    logits_all = logits_all + bh_ref[...]                      # (TB, 128) f32

    col = lax.broadcasted_iota(jnp.int32, logits_all.shape, 1)
    masked = jnp.where(col < n_actions, logits_all, jnp.float32(-jnp.inf))

    # Numerically stable softmax over the real action columns only.
    m = jnp.max(masked, axis=-1, keepdims=True)
    e = jnp.exp(masked - m)                                    # padded cols -> 0
    denom = jnp.sum(e, axis=-1, keepdims=True)
    r = pl.reciprocal(denom, approx=True)                      # EUP vrcp (free slot)
    r = r * (2.0 - denom * r)                                  # one Newton step
    probs = e * r                                              # ~1e-7 rel error

    # Lane-dense (TB, 128) output slab: probs in lanes [0:A], value in lane A,
    # zeros after (probs are already exactly 0 in the padded lanes).
    out_ref[...] = jnp.where(col == n_actions, logits_all, probs).astype(out_ref.dtype)


def prepare_policy_params(w1, b1, w2, b2, w3, b3):
    """Build the fused lane-padded head ONCE per parameter update.

    Weights are in (in, out) layout; biases may be (out,) or (1, out).
    Returns (w1, b1, wh, bh, n_actions) ready for `policy_forward`.
    """
    A = w2.shape[1]
    assert A + 1 <= HEAD_LANES, "output_size + 1 must fit in 128 lanes"

    w1f = w1.astype(jnp.float32)
    b1f = jnp.reshape(b1, (1, HIDDEN)).astype(jnp.float32)

    wh = jnp.zeros((HIDDEN, HEAD_LANES), jnp.float32)
    wh = wh.at[:, :A].set(w2.astype(jnp.float32))
    wh = wh.at[:, A:A + 1].set(jnp.reshape(w3, (HIDDEN, 1)).astype(jnp.float32))

    bh = jnp.zeros((1, HEAD_LANES), jnp.float32)
    bh = bh.at[:, :A].set(jnp.reshape(b2, (1, A)).astype(jnp.float32))
    bh = bh.at[:, A:A + 1].set(jnp.reshape(b3, (1, 1)).astype(jnp.float32))

    return w1f, b1f, wh, bh, A


def _pick_batch_tile(batch, in_size, out_itemsize):
    """Rows per grid step: big enough to hide per-step overhead, capped by a
    conservative double-buffered VMEM budget, and <= ~B/2 so the batch grid
    has >= 2 steps (v7x two-TensorCore split) whenever B >= 16."""
    bytes_per_row = in_size * 4 + HEAD_LANES * out_itemsize
    cap = _VMEM_TILE_BUDGET // (2 * bytes_per_row)            # 2x: double-buffer
    cap = max(8, min(MAX_BATCH_TILE, (cap // 8) * 8))
    half = ((-(-batch // 2) + 7) // 8) * 8                    # round_up(ceil(B/2), 8)
    return max(8, min(cap, half))


def policy_forward(x, params, *, batch_tile=None,
                   out_dtype=jnp.float32, mxu_dtype=jnp.float32):
    """x: (B, input_size) float; params from `prepare_policy_params`."""
    w1f, b1f, wh, bh, A = params
    B, in_size = x.shape

    out_itemsize = jnp.dtype(out_dtype).itemsize
    if batch_tile is None:
        batch_tile = _pick_batch_tile(B, in_size, out_itemsize)
    grid = (pl.cdiv(B, batch_tile),)   # ragged last block handled by Pallas

    # Optional bf16 MXU-operand path (keeps f32 accumulation + elementwise).
    x_in = x.astype(mxu_dtype)
    w1_in = w1f.astype(mxu_dtype)
    wh_in = wh.astype(mxu_dtype)

    weight_bytes = (in_size * HIDDEN + HIDDEN + HIDDEN * HEAD_LANES + HEAD_LANES) * 4
    cost = pl.CostEstimate(
        flops=2 * B * (in_size * HIDDEN + HIDDEN * HEAD_LANES),
        transcendentals=B * HEAD_LANES,
        bytes_accessed=B * in_size * jnp.dtype(mxu_dtype).itemsize
        + B * HEAD_LANES * out_itemsize + weight_bytes,
    )

    kernel = functools.partial(_policy_kernel, n_actions=A)

    out = pl.pallas_call(
        kernel,
        out_shape=jax.ShapeDtypeStruct((B, HEAD_LANES), out_dtype),
        grid=grid,
        in_specs=[
            pl.BlockSpec((batch_tile, in_size), lambda i: (i, 0)),   # x tile
            pl.BlockSpec((in_size, HIDDEN), lambda i: (0, 0)),       # W1 (resident)
            pl.BlockSpec((1, HIDDEN), lambda i: (0, 0)),             # b1
            pl.BlockSpec((HIDDEN, HEAD_LANES), lambda i: (0, 0)),    # fused W
            pl.BlockSpec((1, HEAD_LANES), lambda i: (0, 0)),         # fused b
        ],
        out_specs=pl.BlockSpec((batch_tile, HEAD_LANES), lambda i: (i, 0)),
        compiler_params=pltpu.CompilerParams(
            dimension_semantics=("parallel",)),   # shards batch over v7x TCs
        cost_estimate=cost,
    )(x_in, w1_in, b1f, wh_in, bh)

    probs = out[:, :A]
    values = out[:, A:A + 1]
    return probs, values


def init_params(key, input_size, output_size, hidden=HIDDEN):
    """Deterministic synthetic parameters (PyTorch-like uniform fan-in init)."""
    ks = jax.random.split(key, 6)

    def lin(kw, kb, fan_in, fan_out):
        bound = 1.0 / jnp.sqrt(fan_in)
        w = jax.random.uniform(kw, (fan_in, fan_out), jnp.float32, -bound, bound)
        b = jax.random.uniform(kb, (1, fan_out), jnp.float32, -bound, bound)
        return w, b

    w1, b1 = lin(ks[0], ks[1], input_size, hidden)
    w2, b2 = lin(ks[2], ks[3], hidden, output_size)
    w3, b3 = lin(ks[4], ks[5], hidden, 1)
    return w1, b1, w2, b2, w3, b3


def reference_forward(x, w1, b1, w2, b2, w3, b3):
    h = jnp.maximum(x @ w1 + b1, 0.0)
    probs = jax.nn.softmax(h @ w2 + b2, axis=-1)
    vals = h @ w3 + b3
    return probs, vals


if __name__ == "__main__":
    key = jax.random.PRNGKey(0)
    batch, input_size, output_size = 8, 16, 8

    kx, kp = jax.random.split(key)
    x = jax.random.normal(kx, (batch, input_size), jnp.float32)
    raw_params = init_params(kp, input_size, output_size)

    # Fused-head construction happens once, outside the per-forward path.
    params = prepare_policy_params(*raw_params)

    probs, values = policy_forward(x, params)
    probs = jax.block_until_ready(probs)
    values = jax.block_until_ready(values)

    # sanity-check against a pure-JAX reference
    ref_probs, ref_values = reference_forward(x, *raw_params)
    assert probs.shape == (batch, output_size)
    assert values.shape == (batch, 1)
    assert jnp.allclose(probs, ref_probs, atol=1e-5, rtol=1e-5)
    assert jnp.allclose(values, ref_values, atol=1e-5, rtol=1e-5)
    assert jnp.allclose(jnp.sum(probs, axis=-1), 1.0, atol=1e-5)

    # also exercise a ragged / multi-step grid (no wrapper pad needed)
    batch2 = 20
    x2 = jax.random.normal(jax.random.PRNGKey(1), (batch2, input_size), jnp.float32)
    probs2, values2 = policy_forward(x2, params)
    probs2 = jax.block_until_ready(probs2)
    ref_probs2, ref_values2 = reference_forward(x2, *raw_params)
    assert jnp.allclose(probs2, ref_probs2, atol=1e-5, rtol=1e-5)
    assert jnp.allclose(values2, ref_values2, atol=1e-5, rtol=1e-5)

    print("KERNEL_OK")
</pallas_src>

<mosaic_0001>
module attributes {stable_mosaic.version = 11 : i64} {
  func.func @_policy_kernel(%arg0: i32, %arg1: memref<8x16xf32, #tpu.memory_space<vmem>>, %arg2: memref<16x128xf32, #tpu.memory_space<vmem>>, %arg3: memref<1x128xf32, #tpu.memory_space<vmem>>, %arg4: memref<128x128xf32, #tpu.memory_space<vmem>>, %arg5: memref<1x128xf32, #tpu.memory_space<vmem>>, %arg6: memref<8x128xf32, #tpu.memory_space<vmem>>) attributes {dimension_semantics = [#tpu.dimension_semantics<parallel>], iteration_bounds = array<i64: 1>, scalar_prefetch = 0 : i64, scratch_operands = 0 : i64, tpu.core_type = #tpu.core_type<tc>, window_params = [{transform_indices = @transform_0, window_bounds = array<i64: 8, 16>}, {pipeline_mode = #tpu.pipeline_mode<synchronous>, transform_indices = @transform_1, window_bounds = array<i64: 16, 128>}, {pipeline_mode = #tpu.pipeline_mode<synchronous>, transform_indices = @transform_2, window_bounds = array<i64: 1, 128>}, {pipeline_mode = #tpu.pipeline_mode<synchronous>, transform_indices = @transform_3, window_bounds = array<i64: 128, 128>}, {pipeline_mode = #tpu.pipeline_mode<synchronous>, transform_indices = @transform_4, window_bounds = array<i64: 1, 128>}, {transform_indices = @transform_5, window_bounds = array<i64: 8, 128>}]} {
    %c0 = arith.constant 0 : index
    %c0_0 = arith.constant 0 : index
    %0 = vector.load %arg1[%c0, %c0_0] : memref<8x16xf32, #tpu.memory_space<vmem>>, vector<8x16xf32>
    %c0_1 = arith.constant 0 : index
    %c0_2 = arith.constant 0 : index
    %1 = vector.load %arg2[%c0_1, %c0_2] : memref<16x128xf32, #tpu.memory_space<vmem>>, vector<16x128xf32>
    %cst = arith.constant dense<0.000000e+00> : vector<8x128xf32>
    %2 = tpu.matmul %0, %1, %cst {dimension_numbers = #tpu.dot_dimension_numbers<[1], [0], [0], [1], [0, 0, 1, 1], [], []>} : vector<8x16xf32>, vector<16x128xf32>, vector<8x128xf32> -> vector<8x128xf32>
    %c0_3 = arith.constant 0 : index
    %c0_4 = arith.constant 0 : index
    %3 = vector.load %arg3[%c0_3, %c0_4] : memref<1x128xf32, #tpu.memory_space<vmem>>, vector<1x128xf32>
    %4 = vector.broadcast %3 : vector<1x128xf32> to vector<8x128xf32>
    %5 = arith.addf %2, %4 : vector<8x128xf32>
    %cst_5 = arith.constant 0.000000e+00 : f32
    %6 = vector.broadcast %cst_5 : f32 to vector<8x128xf32>
    %7 = arith.maximumf %5, %6 : vector<8x128xf32>
    %c0_6 = arith.constant 0 : index
    %c0_7 = arith.constant 0 : index
    %8 = vector.load %arg4[%c0_6, %c0_7] : memref<128x128xf32, #tpu.memory_space<vmem>>, vector<128x128xf32>
    %cst_8 = arith.constant dense<0.000000e+00> : vector<8x128xf32>
    %9 = tpu.matmul %7, %8, %cst_8 {dimension_numbers = #tpu.dot_dimension_numbers<[1], [0], [0], [1], [0, 0, 1, 1], [], []>} : vector<8x128xf32>, vector<128x128xf32>, vector<8x128xf32> -> vector<8x128xf32>
    %c0_9 = arith.constant 0 : index
    %c0_10 = arith.constant 0 : index
    %10 = vector.load %arg5[%c0_9, %c0_10] : memref<1x128xf32, #tpu.memory_space<vmem>>, vector<1x128xf32>
    %11 = vector.broadcast %10 : vector<1x128xf32> to vector<8x128xf32>
    %12 = arith.addf %9, %11 : vector<8x128xf32>
    %13 = tpu.iota {dimensions = array<i32: 1>} : vector<8x128xi32>
    %c8_i32 = arith.constant 8 : i32
    %14 = vector.broadcast %c8_i32 : i32 to vector<8x128xi32>
    %15 = arith.cmpi slt, %13, %14 : vector<8x128xi32>
    %cst_11 = arith.constant 0xFF800000 : f32
    %16 = vector.broadcast %cst_11 : f32 to vector<8x128xf32>
    %17 = arith.select %15, %12, %16 : vector<8x128xi1>, vector<8x128xf32>
    %cst_12 = arith.constant dense<0xFF800000> : vector<8xf32>
    %18 = vector.multi_reduction <maximumf>, %17, %cst_12 [1] : vector<8x128xf32> to vector<8xf32>
    %19 = vector.shape_cast %18 : vector<8xf32> to vector<8x1xf32>
    %20 = vector.broadcast %19 : vector<8x1xf32> to vector<8x128xf32>
    %21 = arith.subf %17, %20 : vector<8x128xf32>
    %22 = math.exp %21 : vector<8x128xf32>
    %cst_13 = arith.constant dense<0.000000e+00> : vector<8xf32>
    %23 = vector.multi_reduction <add>, %22, %cst_13 [1] : vector<8x128xf32> to vector<8xf32>
    %24 = vector.shape_cast %23 : vector<8xf32> to vector<8x1xf32>
    %25 = tpu.reciprocal %24 {approx = true} : vector<8x1xf32> -> vector<8x1xf32>
    %26 = arith.mulf %24, %25 : vector<8x1xf32>
    %cst_14 = arith.constant 2.000000e+00 : f32
    %27 = vector.broadcast %cst_14 : f32 to vector<8x1xf32>
    %28 = arith.subf %27, %26 : vector<8x1xf32>
    %29 = arith.mulf %25, %28 : vector<8x1xf32>
    %30 = vector.broadcast %29 : vector<8x1xf32> to vector<8x128xf32>
    %31 = arith.mulf %22, %30 : vector<8x128xf32>
    %c8_i32_15 = arith.constant 8 : i32
    %32 = vector.broadcast %c8_i32_15 : i32 to vector<8x128xi32>
    %33 = arith.cmpi eq, %13, %32 : vector<8x128xi32>
    %34 = arith.select %33, %12, %31 : vector<8x128xi1>, vector<8x128xf32>
    %c0_16 = arith.constant 0 : index
    %c0_17 = arith.constant 0 : index
    %35 = vector.load %arg6[%c0_16, %c0_17] : memref<8x128xf32, #tpu.memory_space<vmem>>, vector<8x128xf32>
    tpu.vector_store %arg6[%c0_16, %c0_17], %34 {strides = array<i32>} : memref<8x128xf32, #tpu.memory_space<vmem>>, vector<8x128xf32>,
    return
  }
  func.func @transform_0(%arg0: i32) -> (i32, i32) {
    %c0_i32 = arith.constant 0 : i32
    %c0_i32_0 = arith.constant 0 : i32
    return %arg0, %c0_i32 : i32, i32
  }
  func.func @transform_1(%arg0: i32) -> (i32, i32) {
    %c0_i32 = arith.constant 0 : i32
    %c0_i32_0 = arith.constant 0 : i32
    %c0_i32_1 = arith.constant 0 : i32
    return %c0_i32, %c0_i32_0 : i32, i32
  }
  func.func @transform_2(%arg0: i32) -> (i32, i32) {
    %c0_i32 = arith.constant 0 : i32
    %c0_i32_0 = arith.constant 0 : i32
    %c0_i32_1 = arith.constant 0 : i32
    return %c0_i32, %c0_i32_0 : i32, i32
  }
  func.func @transform_3(%arg0: i32) -> (i32, i32) {
    %c0_i32 = arith.constant 0 : i32
    %c0_i32_0 = arith.constant 0 : i32
    %c0_i32_1 = arith.constant 0 : i32
    return %c0_i32, %c0_i32_0 : i32, i32
  }
  func.func @transform_4(%arg0: i32) -> (i32, i32) {
    %c0_i32 = arith.constant 0 : i32
    %c0_i32_0 = arith.constant 0 : i32
    %c0_i32_1 = arith.constant 0 : i32
    return %c0_i32, %c0_i32_0 : i32, i32
  }
  func.func @transform_5(%arg0: i32) -> (i32, i32) {
    %c0_i32 = arith.constant 0 : i32
    %c0_i32_0 = arith.constant 0 : i32
    return %arg0, %c0_i32 : i32, i32
  }
}

</mosaic_0001>

<llo_original>
// kernel: tpu_custom_call.1
$region0: #{tpu_custom_call.1}
  #allocation0 [shape = 'u32[]', space=smem, size = 0x4, offset = 0x4, fixed_abs, tag = 'smem constant byte address 0x4 - core index']
  #allocation1 [shape = 'u32[144,128]{1,0:T(1,128)}', space=vmem, size = 0x12000, scoped, tag = 'internal scratch']
  %s0 = inlined_call_operand.hbm [shape: f32[8,16], index: 0, kind: input, shape index: {}]
  %s1 = inlined_call_operand.hbm [shape: f32[16,128], index: 1, kind: input, shape index: {}]
  %s2 = inlined_call_operand.vmem [shape: f32[1,128], index: 2, kind: input, shape index: {}]
  %s3 = inlined_call_operand.hbm [shape: f32[128,128], index: 3, kind: input, shape index: {}]
  %s4 = inlined_call_operand.vmem [shape: f32[1,128], index: 4, kind: input, shape index: {}]
  %s5 = inlined_call_operand.hbm [shape: f32[8,128], index: 5, kind: output, shape index: {}]
  %s6 = sld [smem:[#allocation0]]
  $region42: #{tpu_custom_call.1} parent=0
    _
  %s8 = ssub.s32 1, %s6
  %s9 = scalar_select 0, %s8, %s6
  $region1: #{tpu_custom_call.1} parent=0
    #allocation2 [shape = 'u8[4096]{0}', space=vmem, size = 0x1000, scoped, tag = 'input window, operand 0, single buffered']
    #allocation3 [shape = 's32[1]{0}', space=sflag, size = 0x4, scoped, tag = 'scoped memory for tpu_custom_call.1']
    #allocation4 [shape = 's32[1]{0}', space=sflag, size = 0x4, scoped, tag = 'scoped memory for tpu_custom_call.1']
    #allocation5 [shape = 'u8[8192]{0}', space=vmem, size = 0x2000, scoped, tag = 'input window, operand 1, single buffered']
    #allocation6 [shape = 's32[1]{0}', space=sflag, size = 0x4, scoped, tag = 'scoped memory for tpu_custom_call.1']
    #allocation7 [shape = 'u8[65536]{0}', space=vmem, size = 0x10000, scoped, tag = 'input window, operand 3, single buffered']
    #allocation8 [shape = 'u8[4096]{0}', space=vmem, size = 0x1000, scoped, tag = 'output window, operand 0, single buffered']
    %10 = vsyncpa [#allocation3], 0
    %11 = vsyncpa [#allocation6], 0
    %12 = vsyncpa [#allocation4], 0
    // Predicated region
    $region2: #{tpu_custom_call.1} parent=1 // pred_check
      _
    $region3: #{tpu_custom_call.1} parent=1 // pred_check_branch
      %14 = sbr.rel (0) target = $region5
    $region4: #{tpu_custom_call.1} parent=1 // pred_region
      %s16 = ssub.s32 128, 128
      %17 = vsyncadd [#allocation3], %s16
      %s19 = sshll.u32 [#allocation2], 4
      %s20 = int_to_ptr.vmem [resolvable:$true] %s19
      %22 = dma.hbm_to_vmem [thread:$0]  %s0, 128, %s20, [#allocation3]
    $region5: #{tpu_custom_call.1} parent=1 // pred_fallthru
      _
    // Predicated region
    $region6: #{tpu_custom_call.1} parent=1 // pred_check
      _
    $region7: #{tpu_custom_call.1} parent=1 // pred_check_branch
      %24 = sbr.rel (0) target = $region9
    $region8: #{tpu_custom_call.1} parent=1 // pred_region
      %s26 = ssub.s32 256, 256
      %27 = vsyncadd [#allocation6], %s26
      %s28 = sshll.u32 [#allocation5], 4
      %s29 = int_to_ptr.vmem [resolvable:$true] %s28
      %34 = dma.hbm_to_vmem [thread:$0]  %s1, 256, %s29, [#allocation6], 128, 128, 8
    $region9: #{tpu_custom_call.1} parent=1 // pred_fallthru
      _
    // Predicated region
    $region10: #{tpu_custom_call.1} parent=1 // pred_check
      _
    $region11: #{tpu_custom_call.1} parent=1 // pred_check_branch
      %36 = sbr.rel (0) target = $region13
    $region12: #{tpu_custom_call.1} parent=1 // pred_region
      _
    $region13: #{tpu_custom_call.1} parent=1 // pred_fallthru
      _
    // Predicated region
    $region14: #{tpu_custom_call.1} parent=1 // pred_check
      _
    $region15: #{tpu_custom_call.1} parent=1 // pred_check_branch
      %38 = sbr.rel (0) target = $region17
    $region16: #{tpu_custom_call.1} parent=1 // pred_region
      %s40 = ssub.s32 2048, 2048
      %41 = vsyncadd [#allocation6], %s40
      %s42 = sshll.u32 [#allocation7], 4
      %s43 = int_to_ptr.vmem [resolvable:$true] %s42
      %48 = dma.hbm_to_vmem [thread:$0]  %s3, 2048, %s43, [#allocation6], 128, 128, 8
    $region17: #{tpu_custom_call.1} parent=1 // pred_fallthru
      _
    // Predicated region
    $region18: #{tpu_custom_call.1} parent=1 // pred_check
      _
    $region19: #{tpu_custom_call.1} parent=1 // pred_check_branch
      %50 = sbr.rel (0) target = $region21
    $region20: #{tpu_custom_call.1} parent=1 // pred_region
      _
    $region21: #{tpu_custom_call.1} parent=1 // pred_fallthru
      _
    // Predicated region
    $region22: #{tpu_custom_call.1} parent=1 // pred_check
      _
    $region23: #{tpu_custom_call.1} parent=1 // pred_check_branch
      %52 = sbr.rel (0) target = $region25
    $region24: #{tpu_custom_call.1} parent=1 // pred_region
      %53 = dma.done [#allocation3], 128
    $region25: #{tpu_custom_call.1} parent=1 // pred_fallthru
      _
    // Predicated region
    $region26: #{tpu_custom_call.1} parent=1 // pred_check
      _
    $region27: #{tpu_custom_call.1} parent=1 // pred_check_branch
      %55 = sbr.rel (0) target = $region29
    $region28: #{tpu_custom_call.1} parent=1 // pred_region
      %56 = dma.done [#allocation6], 256
    $region29: #{tpu_custom_call.1} parent=1 // pred_fallthru
      _
    // Predicated region
    $region30: #{tpu_custom_call.1} parent=1 // pred_check
      _
    $region31: #{tpu_custom_call.1} parent=1 // pred_check_branch
      %58 = sbr.rel (0) target = $region33
    $region32: #{tpu_custom_call.1} parent=1 // pred_region
      %59 = dma.done [#allocation6], 2048
    $region33: #{tpu_custom_call.1} parent=1 // pred_fallthru
      _
    %v60 = vld [vmem:[#allocation2] sm:$0xff]
    %v61 = vld [vmem:[#allocation5] sm:$0xff]
    %v62 = vld [vmem:[#allocation5 + $0x8] sm:$0xff]
    %v63 = vld [vmem:[%s2] sm:$0x1]
    %v65 = vlaneseq
    %v66 = vshrl.u32 %v65, 7
    %v67 = vsub.s32 0, %v66
    %v68 = vrot.slane %v63, %v67
    %vm70 = vcmask 130048
    %v72 = vsel %vm70, %v60, 0
    %74 = vmatprep.subr.mxu0 0.0
    %75 = vmatpush1.msra.mxu0 %v61
    %76 = vmatprep.subr.mxu0 0.0
    %77 = vmatpush1.msra.mxu0 %v62
    %78 = vmatprep.subr.mxu0 0.0
    %79 = vmatpush1.msra.mxu0 0.0
    %80 = vmatprep.subr.mxu0 0.0
    %81 = vmatpush1.msra.mxu0 0.0
    %82 = vmatprep.subr.mxu0 0.0
    %83 = vmatpush1.msra.mxu0 0.0
    %84 = vmatprep.subr.mxu0 0.0
    %85 = vmatpush1.msra.mxu0 0.0
    %86 = vmatprep.subr.mxu0 0.0
    %87 = vmatpush1.msra.mxu0 0.0
    %88 = vmatprep.subr.mxu0 0.0
    %89 = vmatpush1.msra.mxu0 0.0
    %90 = vmatprep.subr.mxu0 0.0
    %91 = vmatpush1.msra.mxu0 0.0
    %92 = vmatprep.subr.mxu0 0.0
    %93 = vmatpush1.msra.mxu0 0.0
    %94 = vmatprep.subr.mxu0 0.0
    %95 = vmatpush1.msra.mxu0 0.0
    %96 = vmatprep.subr.mxu0 0.0
    %97 = vmatpush1.msra.mxu0 0.0
    %98 = vmatprep.subr.mxu0 0.0
    %99 = vmatpush1.msra.mxu0 0.0
    %100 = vmatprep.subr.mxu0 0.0
    %101 = vmatpush1.msra.mxu0 0.0
    %102 = vmatprep.subr.mxu0 0.0
    %103 = vmatpush1.msra.mxu0 0.0
    %104 = vmatprep.subr.mxu0 0.0
    %105 = vmatpush1.msra.mxu0 0.0
    %106 = vmatprep.subr.mxu0 0.0
    %107 = vmatpush1.msra.mxu0 0.0
    %108 = vmatprep.subr.mxu0 0.0
    %109 = vmatpush1.msra.mxu0 0.0
    %110 = vmatprep.subr.mxu0 0.0
    %111 = vmatpush1.msra.mxu0 0.0
    %112 = vmatprep.subr.mxu0 0.0
    %113 = vmatpush1.msra.mxu0 0.0
    %114 = vmatprep.subr.mxu0 0.0
    %115 = vmatpush1.msra.mxu0 0.0
    %116 = vmatprep.subr.mxu0 0.0
    %117 = vmatpush1.msra.mxu0 0.0
    %118 = vmatprep.subr.mxu0 0.0
    %119 = vmatpush1.msra.mxu0 0.0
    %120 = vmatprep.subr.mxu0 0.0
    %121 = vmatpush1.msra.mxu0 0.0
    %122 = vmatprep.subr.mxu0 0.0
    %123 = vmatpush1.msra.mxu0 0.0
    %124 = vmatprep.subr.mxu0 0.0
    %125 = vmatpush1.msra.mxu0 0.0
    %126 = vmatprep.subr.mxu0 0.0
    %127 = vmatpush1.msra.mxu0 0.0
    %128 = vmatprep.subr.mxu0 0.0
    %129 = vmatpush1.msra.mxu0 0.0
    %130 = vmatprep.subr.mxu0 0.0
    %131 = vmatpush1.msra.mxu0 0.0
    %132 = vmatprep.subr.mxu0 0.0
    %133 = vmatpush1.msra.mxu0 0.0
    %134 = vmatprep.subr.mxu0 0.0
    %135 = vmatpush1.msra.mxu0 0.0
    %136 = vmatprep.subr.mxu0 0.0
    %137 = vmatpush1.msra.mxu0 0.0
    %138 = vmatprep.mubr.f32.mxu0 0.0
    %139 = vmatmul.mubr.f32.gmra.mrb[0].mxu0 %v72
    %v140 = vpop.f32.mrb[0].mxu0
    %v141 = vadd.f32 %v68, %v140
    %v142 = vpop.f32.mrb[0].mxu0
    %143 = vdwg.mxu0
    %v144 = vmax.f32 %v141, 0.0
    %v145 = vld [vmem:[#allocation7] sm:$0xff]
    %v146 = vld [vmem:[#allocation7 + $0x8] sm:$0xff]
    %v147 = vld [vmem:[#allocation7 + $0x10] sm:$0xff]
    %v148 = vld [vmem:[#allocation7 + $0x18] sm:$0xff]
    %v149 = vld [vmem:[#allocation7 + $0x20] sm:$0xff]
    %v150 = vld [vmem:[#allocation7 + $0x28] sm:$0xff]
    %v151 = vld [vmem:[#allocation7 + $0x30] sm:$0xff]
    %v152 = vld [vmem:[#allocation7 + $0x38] sm:$0xff]
    %v153 = vld [vmem:[#allocation7 + $0x40] sm:$0xff]
    %v154 = vld [vmem:[#allocation7 + $0x48] sm:$0xff]
    %v155 = vld [vmem:[#allocation7 + $0x50] sm:$0xff]
    %v156 = vld [vmem:[#allocation7 + $0x58] sm:$0xff]
    %v157 = vld [vmem:[#allocation7 + $0x60] sm:$0xff]
    %v158 = vld [vmem:[#allocation7 + $0x68] sm:$0xff]
    %v159 = vld [vmem:[#allocation7 + $0x70] sm:$0xff]
    %v160 = vld [vmem:[#allocation7 + $0x78] sm:$0xff]
    %v161 = vld [vmem:[%s4] sm:$0x1]
    %v163 = vlaneseq
    %v164 = vshrl.u32 %v163, 7
    %v165 = vsub.s32 0, %v164
    %v166 = vrot.slane %v161, %v165
    %168 = vmatprep.subr.mxu0 0.0
    %169 = vmatpush1.msra.mxu0 %v145
    %170 = vmatprep.subr.mxu0 0.0
    %171 = vmatpush1.msra.mxu0 %v146
    %172 = vmatprep.subr.mxu0 0.0
    %173 = vmatpush1.msra.mxu0 %v147
    %174 = vmatprep.subr.mxu0 0.0
    %175 = vmatpush1.msra.mxu0 %v148
    %176 = vmatprep.subr.mxu0 0.0
    %177 = vmatpush1.msra.mxu0 %v149
    %178 = vmatprep.subr.mxu0 0.0
    %179 = vmatpush1.msra.mxu0 %v150
    %180 = vmatprep.subr.mxu0 0.0
    %181 = vmatpush1.msra.mxu0 %v151
    %182 = vmatprep.subr.mxu0 0.0
    %183 = vmatpush1.msra.mxu0 %v152
    %184 = vmatprep.subr.mxu0 0.0
    %185 = vmatpush1.msra.mxu0 %v153
    %186 = vmatprep.subr.mxu0 0.0
    %187 = vmatpush1.msra.mxu0 %v154
    %188 = vmatprep.subr.mxu0 0.0
    %189 = vmatpush1.msra.mxu0 %v155
    %190 = vmatprep.subr.mxu0 0.0
    %191 = vmatpush1.msra.mxu0 %v156
    %192 = vmatprep.subr.mxu0 0.0
    %193 = vmatpush1.msra.mxu0 %v157
    %194 = vmatprep.subr.mxu0 0.0
    %195 = vmatpush1.msra.mxu0 %v158
    %196 = vmatprep.subr.mxu0 0.0
    %197 = vmatpush1.msra.mxu0 %v159
    %198 = vmatprep.subr.mxu0 0.0
    %199 = vmatpush1.msra.mxu0 %v160
    %200 = vmatprep.subr.mxu0 0.0
    %201 = vmatpush1.msra.mxu0 0.0
    %202 = vmatprep.subr.mxu0 0.0
    %203 = vmatpush1.msra.mxu0 0.0
    %204 = vmatprep.subr.mxu0 0.0
    %205 = vmatpush1.msra.mxu0 0.0
    %206 = vmatprep.subr.mxu0 0.0
    %207 = vmatpush1.msra.mxu0 0.0
    %208 = vmatprep.subr.mxu0 0.0
    %209 = vmatpush1.msra.mxu0 0.0
    %210 = vmatprep.subr.mxu0 0.0
    %211 = vmatpush1.msra.mxu0 0.0
    %212 = vmatprep.subr.mxu0 0.0
    %213 = vmatpush1.msra.mxu0 0.0
    %214 = vmatprep.subr.mxu0 0.0
    %215 = vmatpush1.msra.mxu0 0.0
    %216 = vmatprep.subr.mxu0 0.0
    %217 = vmatpush1.msra.mxu0 0.0
    %218 = vmatprep.subr.mxu0 0.0
    %219 = vmatpush1.msra.mxu0 0.0
    %220 = vmatprep.subr.mxu0 0.0
    %221 = vmatpush1.msra.mxu0 0.0
    %222 = vmatprep.subr.mxu0 0.0
    %223 = vmatpush1.msra.mxu0 0.0
    %224 = vmatprep.subr.mxu0 0.0
    %225 = vmatpush1.msra.mxu0 0.0
    %226 = vmatprep.subr.mxu0 0.0
    %227 = vmatpush1.msra.mxu0 0.0
    %228 = vmatprep.subr.mxu0 0.0
    %229 = vmatpush1.msra.mxu0 0.0
    %230 = vmatprep.subr.mxu0 0.0
    %231 = vmatpush1.msra.mxu0 0.0
    %232 = vmatprep.mubr.f32.mxu0 0.0
    %233 = vmatmul.mubr.f32.gmra.mrb[0].mxu0 %v144
    %v234 = vpop.f32.mrb[0].mxu0
    %v235 = vadd.f32 %v166, %v234
    %v236 = vpop.f32.mrb[0].mxu0
    %237 = vdwg.mxu0
    %v238 = vlaneseq
    %v239 = vand.u32 %v238, 127
    %vm240 = vcmp.lt.s32.totalorder %v239, 8
    %v241 = vsel %vm240, %v235, -inf
    %242 = vmax.xlane.f32.xlu0 %v241
    %v243 = vpop.xlane.xlu0 %242
    %v244 = vsub.f32 %v241, %v243
    %v245 = vmul.f32 %v244, 1.442695
    %v246 = vpow.pop %v245
    %247 = vadd.xlane.f32.xlu0 %v246
    %v248 = vpop.xlane.xlu0 %247
    %v249 = vrcp.pop %v248
    %v250 = vmul.f32 %v248, %v249
    %v251 = vsub.f32 2.0, %v250
    %v252 = vmul.f32 %v249, %v251
    %v253 = vmul.f32 %v246, %v252
    %vm254 = vcmp.eq.s32.totalorder %v239, 8
    %v255 = vsel %vm254, %v235, %v253
    %256 = vst [vmem:[#allocation8] sm:$0xff] %v255
    // Predicated region
    $region34: #{tpu_custom_call.1} parent=1 // pred_check
      _
    $region35: #{tpu_custom_call.1} parent=1 // pred_check_branch
      %258 = sbr.rel (0) target = $region37
    $region36: #{tpu_custom_call.1} parent=1 // pred_region
      %s260 = ssub.s32 128, 128
      %261 = vsyncadd [#allocation4], %s260
      %s263 = sshll.u32 [#allocation8], 4
      %s264 = int_to_ptr.vmem [resolvable:$true] %s263
      %266 = dma.vmem_to_hbm [thread:$0]  %s264, 128, %s5, [#allocation4]
    $region37: #{tpu_custom_call.1} parent=1 // pred_fallthru
      _
    // Predicated region
    $region38: #{tpu_custom_call.1} parent=1 // pred_check
      _
    $region39: #{tpu_custom_call.1} parent=1 // pred_check_branch
      %268 = sbr.rel (0) target = $region41
    $region40: #{tpu_custom_call.1} parent=1 // pred_region
      %269 = dma.done [#allocation4], 128
    $region41: #{tpu_custom_call.1} parent=1 // pred_fallthru
      _
    %270 = vsyncpa [#allocation3], 1
    %271 = vsyncpa [#allocation6], 1
    %272 = vsyncpa [#allocation4], 1

</llo_original>
